<compile_context>
chip_gen: v7x
topology: tpu7x:2x2x1
jax: 0.10.0
libtpu: 0.0.40
codegen_flags: <defaults>
</compile_context>

<pallas_src>
import jax
import jax.numpy as jnp
from jax.experimental import pallas as pl
from jax.experimental.pallas import tpu as pltpu


# ---------------------------------------------------------------------------
# Kernel
# ---------------------------------------------------------------------------
def dnn_kernel(xT_ref,
               w1_ref, b1_ref,
               w2_ref, b2_ref,
               w3_ref, b3_ref,
               w4_ref, b4_ref,
               w5_ref, b5_ref,
               o_ref):
    # x arrives transposed: (input_dim, batch_tile) with batch on the lane axis.
    h = xT_ref[...].astype(jnp.float32)

    # fc1(+bn1) / fc2(+bn2) / fc3(+bn3) / fc4  -> ReLU.  BN already folded into
    # (wN, bN); dropout is identity in eval mode.  Python loop unrolls at trace.
    for w_ref, b_ref in ((w1_ref, b1_ref), (w2_ref, b2_ref),
                         (w3_ref, b3_ref), (w4_ref, b4_ref)):
        h = jnp.dot(w_ref[...], h, preferred_element_type=jnp.float32) + b_ref[...]
        h = jnp.maximum(h, 0.0)

    # output layer -> sigmoid; result is (1, batch_tile): lane-dense store.
    z = jnp.dot(w5_ref[...], h, preferred_element_type=jnp.float32) + b5_ref[...]
    o_ref[...] = jax.nn.sigmoid(z)


# ---------------------------------------------------------------------------
# Wrapper
# ---------------------------------------------------------------------------
def simple_dnn_forward(x, kernel_params, *, batch_tile=None, input_bf16=False):
    """x: (B, input_dim) float32.  kernel_params: dict w1..w5, b1..b5 (BN folded)."""
    B, D = x.shape

    if batch_tile is None:
        # Large, lane-aligned tiles; cap at 512 so big batches keep >=2 parallel
        # grid steps (v7x megacore), floor at 128 for unmasked lane-dense stores.
        batch_tile = min(512, max(128, int(pl.next_power_of_2(pl.cdiv(B, 2)))))
    assert batch_tile % 128 == 0, "batch_tile must be a multiple of 128 (lane width)"

    n_tiles = pl.cdiv(B, batch_tile)
    padded_B = n_tiles * batch_tile

    # Transpose so batch lives on the lane (last) axis; zero-pad to the tile.
    xT = x.T
    if padded_B != B:
        xT = jnp.pad(xT, ((0, 0), (0, padded_B - B)))
    if input_bf16:
        xT = xT.astype(jnp.bfloat16)   # halves the only B-scaled DMA stream

    operand_names = ("w1", "b1", "w2", "b2", "w3", "b3", "w4", "b4", "w5", "b5")
    operands = [kernel_params[n] for n in operand_names]

    def full_spec(arr):
        nd = arr.ndim
        return pl.BlockSpec(arr.shape, lambda i, _nd=nd: (0,) * _nd)

    in_specs = [pl.BlockSpec((D, batch_tile), lambda i: (0, i))]
    in_specs += [full_spec(a) for a in operands]

    out = pl.pallas_call(
        dnn_kernel,
        out_shape=jax.ShapeDtypeStruct((1, padded_B), jnp.float32),
        grid_spec=pltpu.PrefetchScalarGridSpec(
            num_scalar_prefetch=0,
            grid=(n_tiles,),
            in_specs=in_specs,
            out_specs=pl.BlockSpec((1, batch_tile), lambda i: (0, i)),
        ),
        compiler_params=pltpu.CompilerParams(
            dimension_semantics=("parallel",)),
    )(xT, *operands)

    # Layout plumbing back to the module's (B, 1) output.
    return out[0, :B].reshape(B, 1)


# ---------------------------------------------------------------------------
# Parameters (PyTorch-style layout) + BN folding
# ---------------------------------------------------------------------------
def init_torch_params(key, input_dim):
    """Deterministic PyTorch-style init.  Weights stored (out, in); BN stats synthetic."""
    dims = [input_dim, 128, 64, 32, 16, 1]
    layer_names = ("fc1", "fc2", "fc3", "fc4", "output")
    ks = iter(jax.random.split(key, 64))
    raw = {}
    for name, fan_in, fan_out in zip(layer_names, dims[:-1], dims[1:]):
        bound = 1.0 / (float(fan_in) ** 0.5)
        raw[f"{name}_w"] = jax.random.uniform(next(ks), (fan_out, fan_in),
                                              jnp.float32, -bound, bound)
        raw[f"{name}_b"] = jax.random.uniform(next(ks), (fan_out,),
                                              jnp.float32, -bound, bound)
    for name, feat in (("bn1", 128), ("bn2", 64), ("bn3", 32)):
        raw[f"{name}_gamma"] = 1.0 + 0.1 * jax.random.normal(next(ks), (feat,), jnp.float32)
        raw[f"{name}_beta"] = 0.1 * jax.random.normal(next(ks), (feat,), jnp.float32)
        raw[f"{name}_mean"] = 0.1 * jax.random.normal(next(ks), (feat,), jnp.float32)
        raw[f"{name}_var"] = jnp.abs(1.0 + 0.1 * jax.random.normal(next(ks), (feat,), jnp.float32))
    return raw


def prepare_kernel_params(raw, eps=1e-5):
    """Fold eval-mode BatchNorm into the preceding Linear; biases become (out, 1) columns."""
    bn_for = {"fc1": "bn1", "fc2": "bn2", "fc3": "bn3"}
    p = {}
    for i, name in enumerate(("fc1", "fc2", "fc3", "fc4", "output"), start=1):
        w = raw[f"{name}_w"]                       # (out, in)
        b = raw[f"{name}_b"]                       # (out,)
        if name in bn_for:
            bn = bn_for[name]
            s = raw[f"{bn}_gamma"] / jnp.sqrt(raw[f"{bn}_var"] + eps)
            t = raw[f"{bn}_beta"] - raw[f"{bn}_mean"] * s
            w = w * s[:, None]                     # row-wise scale == out-feature scale
            b = b * s + t
        p[f"w{i}"] = w
        p[f"b{i}"] = b[:, None]                    # (out, 1) for lane broadcast
    return p


# ---------------------------------------------------------------------------
# Pure-JAX reference (mirrors the PyTorch module in eval mode)
# ---------------------------------------------------------------------------
def reference_forward(x, raw, eps=1e-5):
    def lin(h, n):
        return h @ raw[f"{n}_w"].T + raw[f"{n}_b"]

    def bn(h, n):
        return ((h - raw[f"{n}_mean"]) / jnp.sqrt(raw[f"{n}_var"] + eps)
                * raw[f"{n}_gamma"] + raw[f"{n}_beta"])

    h = jnp.maximum(bn(lin(x, "fc1"), "bn1"), 0.0)
    h = jnp.maximum(bn(lin(h, "fc2"), "bn2"), 0.0)
    h = jnp.maximum(bn(lin(h, "fc3"), "bn3"), 0.0)
    h = jnp.maximum(lin(h, "fc4"), 0.0)
    return jax.nn.sigmoid(lin(h, "output"))


if __name__ == "__main__":
    key = jax.random.PRNGKey(0)
    k_in, k_par = jax.random.split(key)

    B, input_dim = 200, 32                     # non-multiple of tile: exercises padding
    x = jax.random.normal(k_in, (B, input_dim), jnp.float32)
    raw = init_torch_params(k_par, input_dim)
    kparams = prepare_kernel_params(raw)

    # f32 path (exact module semantics)
    out = simple_dnn_forward(x, kparams)
    out = jax.block_until_ready(out)
    ref = reference_forward(x, raw)
    assert out.shape == (B, 1)
    assert jnp.allclose(out, ref, atol=1e-4, rtol=1e-4)

    # bf16-input path (optional DMA optimization); compare against the same
    # bf16-rounded input run through the f32 reference.
    out_bf16 = simple_dnn_forward(x, kparams, input_bf16=True)
    out_bf16 = jax.block_until_ready(out_bf16)
    ref_bf16 = reference_forward(x.astype(jnp.bfloat16).astype(jnp.float32), raw)
    assert jnp.allclose(out_bf16, ref_bf16, atol=1e-4, rtol=1e-4)

    print("KERNEL_OK")
</pallas_src>

<mosaic_0001>
module attributes {stable_mosaic.version = 11 : i64} {
  func.func @dnn_kernel(%arg0: i32, %arg1: memref<32x128xf32, #tpu.memory_space<vmem>>, %arg2: memref<128x32xf32, #tpu.memory_space<vmem>>, %arg3: memref<128x1xf32, #tpu.memory_space<vmem>>, %arg4: memref<64x128xf32, #tpu.memory_space<vmem>>, %arg5: memref<64x1xf32, #tpu.memory_space<vmem>>, %arg6: memref<32x64xf32, #tpu.memory_space<vmem>>, %arg7: memref<32x1xf32, #tpu.memory_space<vmem>>, %arg8: memref<16x32xf32, #tpu.memory_space<vmem>>, %arg9: memref<16x1xf32, #tpu.memory_space<vmem>>, %arg10: memref<1x16xf32, #tpu.memory_space<vmem>>, %arg11: memref<1x1xf32, #tpu.memory_space<vmem>>, %arg12: memref<1x128xf32, #tpu.memory_space<vmem>>) attributes {dimension_semantics = [#tpu.dimension_semantics<parallel>], iteration_bounds = array<i64: 2>, scalar_prefetch = 0 : i64, scratch_operands = 0 : i64, tpu.core_type = #tpu.core_type<tc>, window_params = [{transform_indices = @transform_0, window_bounds = array<i64: 32, 128>}, {pipeline_mode = #tpu.pipeline_mode<synchronous>, transform_indices = @transform_1, window_bounds = array<i64: 128, 32>}, {pipeline_mode = #tpu.pipeline_mode<synchronous>, transform_indices = @transform_2, window_bounds = array<i64: 128, 1>}, {pipeline_mode = #tpu.pipeline_mode<synchronous>, transform_indices = @transform_3, window_bounds = array<i64: 64, 128>}, {pipeline_mode = #tpu.pipeline_mode<synchronous>, transform_indices = @transform_4, window_bounds = array<i64: 64, 1>}, {pipeline_mode = #tpu.pipeline_mode<synchronous>, transform_indices = @transform_5, window_bounds = array<i64: 32, 64>}, {pipeline_mode = #tpu.pipeline_mode<synchronous>, transform_indices = @transform_6, window_bounds = array<i64: 32, 1>}, {pipeline_mode = #tpu.pipeline_mode<synchronous>, transform_indices = @transform_7, window_bounds = array<i64: 16, 32>}, {pipeline_mode = #tpu.pipeline_mode<synchronous>, transform_indices = @transform_8, window_bounds = array<i64: 16, 1>}, {pipeline_mode = #tpu.pipeline_mode<synchronous>, transform_indices = @transform_9, window_bounds = array<i64: 1, 16>}, {pipeline_mode = #tpu.pipeline_mode<synchronous>, transform_indices = @transform_10, window_bounds = array<i64: 1, 1>}, {transform_indices = @transform_11, window_bounds = array<i64: 1, 128>}]} {
    %c0 = arith.constant 0 : index
    %c0_0 = arith.constant 0 : index
    %0 = vector.load %arg1[%c0, %c0_0] : memref<32x128xf32, #tpu.memory_space<vmem>>, vector<32x128xf32>
    %c0_1 = arith.constant 0 : index
    %c0_2 = arith.constant 0 : index
    %1 = vector.load %arg2[%c0_1, %c0_2] : memref<128x32xf32, #tpu.memory_space<vmem>>, vector<128x32xf32>
    %cst = arith.constant dense<0.000000e+00> : vector<128x128xf32>
    %2 = tpu.matmul %1, %0, %cst {dimension_numbers = #tpu.dot_dimension_numbers<[1], [0], [0], [1], [0, 0, 1, 1], [], []>} : vector<128x32xf32>, vector<32x128xf32>, vector<128x128xf32> -> vector<128x128xf32>
    %c0_3 = arith.constant 0 : index
    %c0_4 = arith.constant 0 : index
    %3 = vector.load %arg3[%c0_3, %c0_4] : memref<128x1xf32, #tpu.memory_space<vmem>>, vector<128x1xf32>
    %4 = vector.broadcast %3 : vector<128x1xf32> to vector<128x128xf32>
    %5 = arith.addf %2, %4 : vector<128x128xf32>
    %cst_5 = arith.constant 0.000000e+00 : f32
    %6 = vector.broadcast %cst_5 : f32 to vector<128x128xf32>
    %7 = arith.maximumf %5, %6 : vector<128x128xf32>
    %c0_6 = arith.constant 0 : index
    %c0_7 = arith.constant 0 : index
    %8 = vector.load %arg4[%c0_6, %c0_7] : memref<64x128xf32, #tpu.memory_space<vmem>>, vector<64x128xf32>
    %cst_8 = arith.constant dense<0.000000e+00> : vector<64x128xf32>
    %9 = tpu.matmul %8, %7, %cst_8 {dimension_numbers = #tpu.dot_dimension_numbers<[1], [0], [0], [1], [0, 0, 1, 1], [], []>} : vector<64x128xf32>, vector<128x128xf32>, vector<64x128xf32> -> vector<64x128xf32>
    %c0_9 = arith.constant 0 : index
    %c0_10 = arith.constant 0 : index
    %10 = vector.load %arg5[%c0_9, %c0_10] : memref<64x1xf32, #tpu.memory_space<vmem>>, vector<64x1xf32>
    %11 = vector.broadcast %10 : vector<64x1xf32> to vector<64x128xf32>
    %12 = arith.addf %9, %11 : vector<64x128xf32>
    %cst_11 = arith.constant 0.000000e+00 : f32
    %13 = vector.broadcast %cst_11 : f32 to vector<64x128xf32>
    %14 = arith.maximumf %12, %13 : vector<64x128xf32>
    %c0_12 = arith.constant 0 : index
    %c0_13 = arith.constant 0 : index
    %15 = vector.load %arg6[%c0_12, %c0_13] : memref<32x64xf32, #tpu.memory_space<vmem>>, vector<32x64xf32>
    %cst_14 = arith.constant dense<0.000000e+00> : vector<32x128xf32>
    %16 = tpu.matmul %15, %14, %cst_14 {dimension_numbers = #tpu.dot_dimension_numbers<[1], [0], [0], [1], [0, 0, 1, 1], [], []>} : vector<32x64xf32>, vector<64x128xf32>, vector<32x128xf32> -> vector<32x128xf32>
    %c0_15 = arith.constant 0 : index
    %c0_16 = arith.constant 0 : index
    %17 = vector.load %arg7[%c0_15, %c0_16] : memref<32x1xf32, #tpu.memory_space<vmem>>, vector<32x1xf32>
    %18 = vector.broadcast %17 : vector<32x1xf32> to vector<32x128xf32>
    %19 = arith.addf %16, %18 : vector<32x128xf32>
    %cst_17 = arith.constant 0.000000e+00 : f32
    %20 = vector.broadcast %cst_17 : f32 to vector<32x128xf32>
    %21 = arith.maximumf %19, %20 : vector<32x128xf32>
    %c0_18 = arith.constant 0 : index
    %c0_19 = arith.constant 0 : index
    %22 = vector.load %arg8[%c0_18, %c0_19] : memref<16x32xf32, #tpu.memory_space<vmem>>, vector<16x32xf32>
    %cst_20 = arith.constant dense<0.000000e+00> : vector<16x128xf32>
    %23 = tpu.matmul %22, %21, %cst_20 {dimension_numbers = #tpu.dot_dimension_numbers<[1], [0], [0], [1], [0, 0, 1, 1], [], []>} : vector<16x32xf32>, vector<32x128xf32>, vector<16x128xf32> -> vector<16x128xf32>
    %c0_21 = arith.constant 0 : index
    %c0_22 = arith.constant 0 : index
    %24 = vector.load %arg9[%c0_21, %c0_22] : memref<16x1xf32, #tpu.memory_space<vmem>>, vector<16x1xf32>
    %25 = vector.broadcast %24 : vector<16x1xf32> to vector<16x128xf32>
    %26 = arith.addf %23, %25 : vector<16x128xf32>
    %cst_23 = arith.constant 0.000000e+00 : f32
    %27 = vector.broadcast %cst_23 : f32 to vector<16x128xf32>
    %28 = arith.maximumf %26, %27 : vector<16x128xf32>
    %c0_24 = arith.constant 0 : index
    %c0_25 = arith.constant 0 : index
    %29 = vector.load %arg10[%c0_24, %c0_25] : memref<1x16xf32, #tpu.memory_space<vmem>>, vector<1x16xf32>
    %cst_26 = arith.constant dense<0.000000e+00> : vector<1x128xf32>
    %30 = tpu.matmul %29, %28, %cst_26 {dimension_numbers = #tpu.dot_dimension_numbers<[1], [0], [0], [1], [0, 0, 1, 1], [], []>} : vector<1x16xf32>, vector<16x128xf32>, vector<1x128xf32> -> vector<1x128xf32>
    %c0_27 = arith.constant 0 : index
    %c0_28 = arith.constant 0 : index
    %31 = vector.load %arg11[%c0_27, %c0_28] : memref<1x1xf32, #tpu.memory_space<vmem>>, vector<1x1xf32>
    %32 = vector.broadcast %31 : vector<1x1xf32> to vector<1x128xf32>
    %33 = arith.addf %30, %32 : vector<1x128xf32>
    %34 = arith.negf %33 : vector<1x128xf32>
    %35 = math.exp %34 : vector<1x128xf32>
    %cst_29 = arith.constant 1.000000e+00 : f32
    %36 = vector.broadcast %cst_29 : f32 to vector<1x128xf32>
    %37 = arith.addf %36, %35 : vector<1x128xf32>
    %38 = arith.divf %36, %37 : vector<1x128xf32>
    %c0_30 = arith.constant 0 : index
    %c0_31 = arith.constant 0 : index
    %39 = vector.load %arg12[%c0_30, %c0_31] : memref<1x128xf32, #tpu.memory_space<vmem>>, vector<1x128xf32>
    tpu.vector_store %arg12[%c0_30, %c0_31], %38 {strides = array<i32>} : memref<1x128xf32, #tpu.memory_space<vmem>>, vector<1x128xf32>,
    return
  }
  func.func @transform_0(%arg0: i32) -> (i32, i32) {
    %c0_i32 = arith.constant 0 : i32
    %c0_i32_0 = arith.constant 0 : i32
    return %c0_i32, %arg0 : i32, i32
  }
  func.func @transform_1(%arg0: i32) -> (i32, i32) {
    %c0_i32 = arith.constant 0 : i32
    %c0_i32_0 = arith.constant 0 : i32
    %c0_i32_1 = arith.constant 0 : i32
    return %c0_i32, %c0_i32_0 : i32, i32
  }
  func.func @transform_2(%arg0: i32) -> (i32, i32) {
    %c0_i32 = arith.constant 0 : i32
    %c0_i32_0 = arith.constant 0 : i32
    %c0_i32_1 = arith.constant 0 : i32
    return %c0_i32, %c0_i32_0 : i32, i32
  }
  func.func @transform_3(%arg0: i32) -> (i32, i32) {
    %c0_i32 = arith.constant 0 : i32
    %c0_i32_0 = arith.constant 0 : i32
    %c0_i32_1 = arith.constant 0 : i32
    return %c0_i32, %c0_i32_0 : i32, i32
  }
  func.func @transform_4(%arg0: i32) -> (i32, i32) {
    %c0_i32 = arith.constant 0 : i32
    %c0_i32_0 = arith.constant 0 : i32
    %c0_i32_1 = arith.constant 0 : i32
    return %c0_i32, %c0_i32_0 : i32, i32
  }
  func.func @transform_5(%arg0: i32) -> (i32, i32) {
    %c0_i32 = arith.constant 0 : i32
    %c0_i32_0 = arith.constant 0 : i32
    %c0_i32_1 = arith.constant 0 : i32
    return %c0_i32, %c0_i32_0 : i32, i32
  }
  func.func @transform_6(%arg0: i32) -> (i32, i32) {
    %c0_i32 = arith.constant 0 : i32
    %c0_i32_0 = arith.constant 0 : i32
    %c0_i32_1 = arith.constant 0 : i32
    return %c0_i32, %c0_i32_0 : i32, i32
  }
  func.func @transform_7(%arg0: i32) -> (i32, i32) {
    %c0_i32 = arith.constant 0 : i32
    %c0_i32_0 = arith.constant 0 : i32
    %c0_i32_1 = arith.constant 0 : i32
    return %c0_i32, %c0_i32_0 : i32, i32
  }
  func.func @transform_8(%arg0: i32) -> (i32, i32) {
    %c0_i32 = arith.constant 0 : i32
    %c0_i32_0 = arith.constant 0 : i32
    %c0_i32_1 = arith.constant 0 : i32
    return %c0_i32, %c0_i32_0 : i32, i32
  }
  func.func @transform_9(%arg0: i32) -> (i32, i32) {
    %c0_i32 = arith.constant 0 : i32
    %c0_i32_0 = arith.constant 0 : i32
    %c0_i32_1 = arith.constant 0 : i32
    return %c0_i32, %c0_i32_0 : i32, i32
  }
  func.func @transform_10(%arg0: i32) -> (i32, i32) {
    %c0_i32 = arith.constant 0 : i32
    %c0_i32_0 = arith.constant 0 : i32
    %c0_i32_1 = arith.constant 0 : i32
    return %c0_i32, %c0_i32_0 : i32, i32
  }
  func.func @transform_11(%arg0: i32) -> (i32, i32) {
    %c0_i32 = arith.constant 0 : i32
    %c0_i32_0 = arith.constant 0 : i32
    return %c0_i32, %arg0 : i32, i32
  }
}

</mosaic_0001>

<llo_original>
// kernel: tpu_custom_call.1
$region0: #{tpu_custom_call.1}
  #allocation0 [shape = 'u32[]', space=smem, size = 0x4, offset = 0x4, fixed_abs, tag = 'smem constant byte address 0x4 - core index']
  #allocation1 [shape = 'u32[144,128]{1,0:T(1,128)}', space=vmem, size = 0x12000, scoped, tag = 'internal scratch']
  #allocation2 [shape = 'f32[1,1]{1,0:T(1,128)S(1)}', space=vmem, size = 0x200, scoped, tag = 'scoped memory for tpu_custom_call.1']
  %s0 = inlined_call_operand.vmem [shape: f32[32,256], index: 0, kind: input, shape index: {}]
  %s1 = inlined_call_operand.vmem [shape: f32[128,32], index: 1, kind: input, shape index: {}]
  %s2 = inlined_call_operand.vmem [shape: f32[128,1], index: 2, kind: input, shape index: {}]
  %s3 = inlined_call_operand.vmem [shape: f32[64,128], index: 3, kind: input, shape index: {}]
  %s4 = inlined_call_operand.vmem [shape: f32[64,1], index: 4, kind: input, shape index: {}]
  %s5 = inlined_call_operand.vmem [shape: f32[32,64], index: 5, kind: input, shape index: {}]
  %s6 = inlined_call_operand.vmem [shape: f32[32,1], index: 6, kind: input, shape index: {}]
  %s7 = inlined_call_operand.vmem [shape: f32[16,32], index: 7, kind: input, shape index: {}]
  %s8 = inlined_call_operand.vmem [shape: f32[16,1], index: 8, kind: input, shape index: {}]
  %s9 = inlined_call_operand.vmem [shape: f32[1,16], index: 9, kind: input, shape index: {}]
  %s10 = inlined_call_operand.<no memory space> [shape: f32[1,1], index: 10, kind: input, shape index: {}]
  %s11 = inlined_call_operand.hbm [shape: f32[1,256], index: 11, kind: output, shape index: {}]
  %s12 = sld [smem:[#allocation0]]
  $region115: #{tpu_custom_call.1} parent=0
    _
  %s14 = ssub.s32 1, %s12
  %s15 = scalar_select 0, %s14, %s12
  %v16 = vstv %s10
  %17 = vst [vmem:[#allocation2] sm:$0x1] %v16
  $region1: #{tpu_custom_call.1} parent=0
    #allocation3 [shape = 'u8[32768]{0}', space=vmem, size = 0x8000, scoped, tag = 'input window, operand 0']
    #allocation4 [shape = 'u8[1024]{0}', space=vmem, size = 0x400, scoped, tag = 'output window, operand 0']
    #allocation5 [shape = 's32[2]{0}', space=sflag, size = 0x8, scoped, tag = 'scoped memory for tpu_custom_call.1']
    %18 = vsyncpa [#allocation5], 0
    %s19 = scalar_lea.sflag [#allocation5], 1
    %20 = vsyncpa %s19, 0
    loop: start=0, step=1, limit=4
    $region2: #{tpu_custom_call.1} parent=1 // loop_pre_header
      _
    $region3: #{tpu_custom_call.1} parent=1 // loop_header
      %s22 = sphi 0, %s26
      %p23 = scmp.ge.s32.totalorder %s22, 4
      %s32 = sphi 0, %s34
      %s35 = sphi 0, %s32
      %s36 = sphi 0, %s35
      %s52 = sphi 0, %s36
      %s56 = sphi 0, %s56
      %s58 = sphi 0, %s56
      %s59 = sphi 0, %s58
      %s73 = sphi 0, %s59
      %s77 = sphi 0, %s77
      %s79 = sphi 0, %s77
      %s80 = sphi 0, %s79
      %s94 = sphi 0, %s80
      %s98 = sphi 0, %s98
      %s100 = sphi 0, %s98
      %s101 = sphi 0, %s100
      %s115 = sphi 0, %s101
      %s119 = sphi 0, %s119
      %s121 = sphi 0, %s119
      %s122 = sphi 0, %s121
      %s136 = sphi 0, %s122
      %s140 = sphi 0, %s140
      %s142 = sphi 0, %s140
      %s143 = sphi 0, %s142
      %s157 = sphi 0, %s143
      %s161 = sphi 0, %s161
      %s163 = sphi 0, %s161
      %s164 = sphi 0, %s163
      %s178 = sphi 0, %s164
      %s182 = sphi 0, %s182
      %s184 = sphi 0, %s182
      %s185 = sphi 0, %s184
      %s199 = sphi 0, %s185
      %s203 = sphi 0, %s203
      %s205 = sphi 0, %s203
      %s206 = sphi 0, %s205
      %s220 = sphi 0, %s206
      %s224 = sphi 0, %s224
      %s226 = sphi 0, %s224
      %s227 = sphi 0, %s226
      %s241 = sphi 0, %s227
      %s245 = sphi 0, %s245
      %s247 = sphi 0, %s245
      %s248 = sphi 0, %s247
      %s262 = sphi 0, %s248
      %s268 = sphi 0, %s270
      %s271 = sphi 0, %s268
      %s272 = sphi 0, %s271
      %s288 = sphi 0, %s272
    $region4: #{tpu_custom_call.1} parent=1 // loop_header_branch
      %25 = sbr.rel (%p23) target = $region8
    $region5: #{tpu_custom_call.1} parent=1 // loop_body
      %s27 = ssub.s32 %s22, 1
      %s28 = ssub.s32 %s22, 2
      %s29 = sadd.s32 %s22, 1
      %s30 = ssub.s32 %s22, %s29
      %p31 = scmp.eq.s32.totalorder %s30, 0
      %s33 = sadd.s32 %s32, 1
      %s34 = scalar_select %p31, %s32, %s33
      %p37 = pneg %p31
      %p38 = scmp.eq.s32.totalorder %s22, 1
      %p39 = por %p37, %p38
      %p40 = scmp.ne.s32.totalorder %s32, %s35
      %p41 = scmp.eq.s32.totalorder %s22, 0
      %p42 = por %p40, %p41
      %p43 = scmp.ne.s32.totalorder %s32, %s35
      %p44 = scmp.eq.s32.totalorder %s27, 1
      %p45 = por %p43, %p44
      %p46 = scmp.ne.s32.totalorder %s35, %s36
      %p47 = scmp.eq.s32.totalorder %s27, 0
      %p48 = por %p46, %p47
      %p49 = scmp.ne.s32.totalorder %s35, %s36
      %p50 = scmp.eq.s32.totalorder %s28, 1
      %p51 = por %p49, %p50
      %p53 = scmp.ne.s32.totalorder %s36, %s52
      %p54 = scmp.eq.s32.totalorder %s28, 0
      %p55 = por %p53, %p54
      %s57 = sadd.s32 %s56, 1
      %p60 = scmp.eq.s32.totalorder %s22, 1
      %p61 = scmp.ne.s32.totalorder %s56, %s58
      %p62 = scmp.eq.s32.totalorder %s22, 0
      %p63 = por %p61, %p62
      %p64 = scmp.ne.s32.totalorder %s56, %s58
      %p65 = scmp.eq.s32.totalorder %s27, 1
      %p66 = por %p64, %p65
      %p67 = scmp.ne.s32.totalorder %s58, %s59
      %p68 = scmp.eq.s32.totalorder %s27, 0
      %p69 = por %p67, %p68
      %p70 = scmp.ne.s32.totalorder %s58, %s59
      %p71 = scmp.eq.s32.totalorder %s28, 1
      %p72 = por %p70, %p71
      %p74 = scmp.ne.s32.totalorder %s59, %s73
      %p75 = scmp.eq.s32.totalorder %s28, 0
      %p76 = por %p74, %p75
      %s78 = sadd.s32 %s77, 1
      %p81 = scmp.eq.s32.totalorder %s22, 1
      %p82 = scmp.ne.s32.totalorder %s77, %s79
      %p83 = scmp.eq.s32.totalorder %s22, 0
      %p84 = por %p82, %p83
      %p85 = scmp.ne.s32.totalorder %s77, %s79
      %p86 = scmp.eq.s32.totalorder %s27, 1
      %p87 = por %p85, %p86
      %p88 = scmp.ne.s32.totalorder %s79, %s80
      %p89 = scmp.eq.s32.totalorder %s27, 0
      %p90 = por %p88, %p89
      %p91 = scmp.ne.s32.totalorder %s79, %s80
      %p92 = scmp.eq.s32.totalorder %s28, 1
      %p93 = por %p91, %p92
      %p95 = scmp.ne.s32.totalorder %s80, %s94
      %p96 = scmp.eq.s32.totalorder %s28, 0
      %p97 = por %p95, %p96
      %s99 = sadd.s32 %s98, 1
      %p102 = scmp.eq.s32.totalorder %s22, 1
      %p103 = scmp.ne.s32.totalorder %s98, %s100
      %p104 = scmp.eq.s32.totalorder %s22, 0
      %p105 = por %p103, %p104
      %p106 = scmp.ne.s32.totalorder %s98, %s100
      %p107 = scmp.eq.s32.totalorder %s27, 1
      %p108 = por %p106, %p107
      %p109 = scmp.ne.s32.totalorder %s100, %s101
      %p110 = scmp.eq.s32.totalorder %s27, 0
      %p111 = por %p109, %p110
      %p112 = scmp.ne.s32.totalorder %s100, %s101
      %p113 = scmp.eq.s32.totalorder %s28, 1
      %p114 = por %p112, %p113
      %p116 = scmp.ne.s32.totalorder %s101, %s115
      %p117 = scmp.eq.s32.totalorder %s28, 0
      %p118 = por %p116, %p117
      %s120 = sadd.s32 %s119, 1
      %p123 = scmp.eq.s32.totalorder %s22, 1
      %p124 = scmp.ne.s32.totalorder %s119, %s121
      %p125 = scmp.eq.s32.totalorder %s22, 0
      %p126 = por %p124, %p125
      %p127 = scmp.ne.s32.totalorder %s119, %s121
      %p128 = scmp.eq.s32.totalorder %s27, 1
      %p129 = por %p127, %p128
      %p130 = scmp.ne.s32.totalorder %s121, %s122
      %p131 = scmp.eq.s32.totalorder %s27, 0
      %p132 = por %p130, %p131
      %p133 = scmp.ne.s32.totalorder %s121, %s122
      %p134 = scmp.eq.s32.totalorder %s28, 1
      %p135 = por %p133, %p134
      %p137 = scmp.ne.s32.totalorder %s122, %s136
      %p138 = scmp.eq.s32.totalorder %s28, 0
      %p139 = por %p137, %p138
      %s141 = sadd.s32 %s140, 1
      %p144 = scmp.eq.s32.totalorder %s22, 1
      %p145 = scmp.ne.s32.totalorder %s140, %s142
      %p146 = scmp.eq.s32.totalorder %s22, 0
      %p147 = por %p145, %p146
      %p148 = scmp.ne.s32.totalorder %s140, %s142
      %p149 = scmp.eq.s32.totalorder %s27, 1
      %p150 = por %p148, %p149
      %p151 = scmp.ne.s32.totalorder %s142, %s143
      %p152 = scmp.eq.s32.totalorder %s27, 0
      %p153 = por %p151, %p152
      %p154 = scmp.ne.s32.totalorder %s142, %s143
      %p155 = scmp.eq.s32.totalorder %s28, 1
      %p156 = por %p154, %p155
      %p158 = scmp.ne.s32.totalorder %s143, %s157
      %p159 = scmp.eq.s32.totalorder %s28, 0
      %p160 = por %p158, %p159
      %s162 = sadd.s32 %s161, 1
      %p165 = scmp.eq.s32.totalorder %s22, 1
      %p166 = scmp.ne.s32.totalorder %s161, %s163
      %p167 = scmp.eq.s32.totalorder %s22, 0
      %p168 = por %p166, %p167
      %p169 = scmp.ne.s32.totalorder %s161, %s163
      %p170 = scmp.eq.s32.totalorder %s27, 1
      %p171 = por %p169, %p170
      %p172 = scmp.ne.s32.totalorder %s163, %s164
      %p173 = scmp.eq.s32.totalorder %s27, 0
      %p174 = por %p172, %p173
      %p175 = scmp.ne.s32.totalorder %s163, %s164
      %p176 = scmp.eq.s32.totalorder %s28, 1
      %p177 = por %p175, %p176
      %p179 = scmp.ne.s32.totalorder %s164, %s178
      %p180 = scmp.eq.s32.totalorder %s28, 0
      %p181 = por %p179, %p180
      %s183 = sadd.s32 %s182, 1
      %p186 = scmp.eq.s32.totalorder %s22, 1
      %p187 = scmp.ne.s32.totalorder %s182, %s184
      %p188 = scmp.eq.s32.totalorder %s22, 0
      %p189 = por %p187, %p188
      %p190 = scmp.ne.s32.totalorder %s182, %s184
      %p191 = scmp.eq.s32.totalorder %s27, 1
      %p192 = por %p190, %p191
      %p193 = scmp.ne.s32.totalorder %s184, %s185
      %p194 = scmp.eq.s32.totalorder %s27, 0
      %p195 = por %p193, %p194
      %p196 = scmp.ne.s32.totalorder %s184, %s185
      %p197 = scmp.eq.s32.totalorder %s28, 1
      %p198 = por %p196, %p197
      %p200 = scmp.ne.s32.totalorder %s185, %s199
      %p201 = scmp.eq.s32.totalorder %s28, 0
      %p202 = por %p200, %p201
      %s204 = sadd.s32 %s203, 1
      %p207 = scmp.eq.s32.totalorder %s22, 1
      %p208 = scmp.ne.s32.totalorder %s203, %s205
      %p209 = scmp.eq.s32.totalorder %s22, 0
      %p210 = por %p208, %p209
      %p211 = scmp.ne.s32.totalorder %s203, %s205
      %p212 = scmp.eq.s32.totalorder %s27, 1
      %p213 = por %p211, %p212
      %p214 = scmp.ne.s32.totalorder %s205, %s206
      %p215 = scmp.eq.s32.totalorder %s27, 0
      %p216 = por %p214, %p215
      %p217 = scmp.ne.s32.totalorder %s205, %s206
      %p218 = scmp.eq.s32.totalorder %s28, 1
      %p219 = por %p217, %p218
      %p221 = scmp.ne.s32.totalorder %s206, %s220
      %p222 = scmp.eq.s32.totalorder %s28, 0
      %p223 = por %p221, %p222
      %s225 = sadd.s32 %s224, 1
      %p228 = scmp.eq.s32.totalorder %s22, 1
      %p229 = scmp.ne.s32.totalorder %s224, %s226
      %p230 = scmp.eq.s32.totalorder %s22, 0
      %p231 = por %p229, %p230
      %p232 = scmp.ne.s32.totalorder %s224, %s226
      %p233 = scmp.eq.s32.totalorder %s27, 1
      %p234 = por %p232, %p233
      %p235 = scmp.ne.s32.totalorder %s226, %s227
      %p236 = scmp.eq.s32.totalorder %s27, 0
      %p237 = por %p235, %p236
      %p238 = scmp.ne.s32.totalorder %s226, %s227
      %p239 = scmp.eq.s32.totalorder %s28, 1
      %p240 = por %p238, %p239
      %p242 = scmp.ne.s32.totalorder %s227, %s241
      %p243 = scmp.eq.s32.totalorder %s28, 0
      %p244 = por %p242, %p243
      %s246 = sadd.s32 %s245, 1
      %p249 = scmp.eq.s32.totalorder %s22, 1
      %p250 = scmp.ne.s32.totalorder %s245, %s247
      %p251 = scmp.eq.s32.totalorder %s22, 0
      %p252 = por %p250, %p251
      %p253 = scmp.ne.s32.totalorder %s245, %s247
      %p254 = scmp.eq.s32.totalorder %s27, 1
      %p255 = por %p253, %p254
      %p256 = scmp.ne.s32.totalorder %s247, %s248
      %p257 = scmp.eq.s32.totalorder %s27, 0
      %p258 = por %p256, %p257
      %p259 = scmp.ne.s32.totalorder %s247, %s248
      %p260 = scmp.eq.s32.totalorder %s28, 1
      %p261 = por %p259, %p260
      %p263 = scmp.ne.s32.totalorder %s248, %s262
      %p264 = scmp.eq.s32.totalorder %s28, 0
      %p265 = por %p263, %p264
      %s266 = ssub.s32 %s22, %s29
      %p267 = scmp.eq.s32.totalorder %s266, 0
      %s269 = sadd.s32 %s268, 1
      %s270 = scalar_select %p267, %s268, %s269
      %p273 = pneg %p267
      %p274 = scmp.eq.s32.totalorder %s22, 1
      %p275 = por %p273, %p274
      %p276 = scmp.ne.s32.totalorder %s268, %s271
      %p277 = scmp.eq.s32.totalorder %s22, 0
      %p278 = por %p276, %p277
      %p279 = scmp.ne.s32.totalorder %s268, %s271
      %p280 = scmp.eq.s32.totalorder %s27, 1
      %p281 = por %p279, %p280
      %p282 = scmp.ne.s32.totalorder %s271, %s272
      %p283 = scmp.eq.s32.totalorder %s27, 0
      %p284 = por %p282, %p283
      %p285 = scmp.ne.s32.totalorder %s271, %s272
      %p286 = scmp.eq.s32.totalorder %s28, 1
      %p287 = por %p285, %p286
      %p289 = scmp.ne.s32.totalorder %s272, %s288
      %p290 = scmp.eq.s32.totalorder %s28, 0
      %p291 = por %p289, %p290
      %p292 = scmp.le.s32.totalorder 1, %s22
      %p293 = scmp.lt.s32.totalorder %s22, 3
      %p294 = pnand %p292, %p293
      %p295 = pneg %p294
      // Predicated region
      $region9: #{tpu_custom_call.1} parent=5 // pred_check
        _
      $region10: #{tpu_custom_call.1} parent=5 // pred_check_branch
        %297 = sbr.rel (%p294) target = $region12
      $region11: #{tpu_custom_call.1} parent=5 // pred_region
        %s298 = ssub.s32 %s22, 1
        // Predicated region
        $region13: #{tpu_custom_call.1} parent=11 // pred_check
          %p299 = pneg %p69
        $region14: #{tpu_custom_call.1} parent=11 // pred_check_branch
          %301 = sbr.rel (%p299) target = $region16
        $region15: #{tpu_custom_call.1} parent=11 // pred_region
          _
        $region16: #{tpu_custom_call.1} parent=11 // pred_fallthru
          _
        // Predicated region
        $region17: #{tpu_custom_call.1} parent=11 // pred_check
          %p302 = pneg %p90
        $region18: #{tpu_custom_call.1} parent=11 // pred_check_branch
          %304 = sbr.rel (%p302) target = $region20
        $region19: #{tpu_custom_call.1} parent=11 // pred_region
          _
        $region20: #{tpu_custom_call.1} parent=11 // pred_fallthru
          _
        // Predicated region
        $region21: #{tpu_custom_call.1} parent=11 // pred_check
          %p305 = pneg %p111
        $region22: #{tpu_custom_call.1} parent=11 // pred_check_branch
          %307 = sbr.rel (%p305) target = $region24
        $region23: #{tpu_custom_call.1} parent=11 // pred_region
          _
        $region24: #{tpu_custom_call.1} parent=11 // pred_fallthru
          _
        // Predicated region
        $region25: #{tpu_custom_call.1} parent=11 // pred_check
          %p308 = pneg %p132
        $region26: #{tpu_custom_call.1} parent=11 // pred_check_branch
          %310 = sbr.rel (%p308) target = $region28
        $region27: #{tpu_custom_call.1} parent=11 // pred_region
          _
        $region28: #{tpu_custom_call.1} parent=11 // pred_fallthru
          _
        // Predicated region
        $region29: #{tpu_custom_call.1} parent=11 // pred_check
          %p311 = pneg %p153
        $region30: #{tpu_custom_call.1} parent=11 // pred_check_branch
          %313 = sbr.rel (%p311) target = $region32
        $region31: #{tpu_custom_call.1} parent=11 // pred_region
          _
        $region32: #{tpu_custom_call.1} parent=11 // pred_fallthru
          _
        // Predicated region
        $region33: #{tpu_custom_call.1} parent=11 // pred_check
          %p314 = pneg %p174
        $region34: #{tpu_custom_call.1} parent=11 // pred_check_branch
          %316 = sbr.rel (%p314) target = $region36
        $region35: #{tpu_custom_call.1} parent=11 // pred_region
          _
        $region36: #{tpu_custom_call.1} parent=11 // pred_fallthru
          _
        // Predicated region
        $region37: #{tpu_custom_call.1} parent=11 // pred_check
          %p317 = pneg %p195
        $region38: #{tpu_custom_call.1} parent=11 // pred_check_branch
          %319 = sbr.rel (%p317) target = $region40
        $region39: #{tpu_custom_call.1} parent=11 // pred_region
          _
        $region40: #{tpu_custom_call.1} parent=11 // pred_fallthru
          _
        // Predicated region
        $region41: #{tpu_custom_call.1} parent=11 // pred_check
          %p320 = pneg %p216
        $region42: #{tpu_custom_call.1} parent=11 // pred_check_branch
          %322 = sbr.rel (%p320) target = $region44
        $region43: #{tpu_custom_call.1} parent=11 // pred_region
          _
        $region44: #{tpu_custom_call.1} parent=11 // pred_fallthru
          _
        // Predicated region
        $region45: #{tpu_custom_call.1} parent=11 // pred_check
          %p323 = pneg %p237
        $region46: #{tpu_custom_call.1} parent=11 // pred_check_branch
          %325 = sbr.rel (%p323) target = $region48
        $region47: #{tpu_custom_call.1} parent=11 // pred_region
          _
        $region48: #{tpu_custom_call.1} parent=11 // pred_fallthru
          _
        // Predicated region
        $region49: #{tpu_custom_call.1} parent=11 // pred_check
          %p326 = pneg %p258
        $region50: #{tpu_custom_call.1} parent=11 // pred_check_branch
          %328 = sbr.rel (%p326) target = $region52
        $region51: #{tpu_custom_call.1} parent=11 // pred_region
          _
        $region52: #{tpu_custom_call.1} parent=11 // pred_fallthru
          _
      $region12: #{tpu_custom_call.1} parent=5 // pred_fallthru
        _
      %p329 = scmp.lt.s32.totalorder %s22, 2
      // Predicated region
      $region53: #{tpu_custom_call.1} parent=5 // pred_check
        %p330 = pneg %p329
      $region54: #{tpu_custom_call.1} parent=5 // pred_check_branch
        %332 = sbr.rel (%p330) target = $region56
      $region55: #{tpu_custom_call.1} parent=5 // pred_region
        // Predicated region
        $region57: #{tpu_custom_call.1} parent=55 // pred_check
          %p333 = pneg %p42
        $region58: #{tpu_custom_call.1} parent=55 // pred_check_branch
          %335 = sbr.rel (%p333) target = $region60
        $region59: #{tpu_custom_call.1} parent=55 // pred_region
          %s336 = sand.u32 %s32, 1
          %s337 = sand.u32 %s32, 1
          %s338 = smul.addr %s337, 32
          %s339 = scalar_lea.vmem [#allocation3], %s338
          %s340 = smul.addr %s22, 8
          %s341 = scalar_lea.vmem %s0, %s340
          // Predicated region
          $region61: #{tpu_custom_call.1} parent=59 // pred_check
            _
          $region62: #{tpu_custom_call.1} parent=59 // pred_check_branch
            %343 = sbr.rel (0) target = $region64
          $region63: #{tpu_custom_call.1} parent=59 // pred_region
            // Predicated region
            $region65: #{tpu_custom_call.1} parent=63 // pred_check
              _
            $region66: #{tpu_custom_call.1} parent=63 // pred_check_branch
              %345 = sbr.rel (0) target = $region68
            $region67: #{tpu_custom_call.1} parent=63 // pred_region
              // Predicated region
              $region80: #{tpu_custom_call.1} parent=67 // pred_check
                _
              $region81: #{tpu_custom_call.1} parent=67 // pred_check_branch
                %366 = sbr.rel (0) target = $region83
              $region82: #{tpu_custom_call.1} parent=67 // pred_region
                loop: start=0, step=1, limit=1
                $region84: #{tpu_custom_call.1} parent=82 // loop_pre_header
                  _
                $region85: #{tpu_custom_call.1} parent=82 // loop_header
                  %s368 = sphi 0, %s372
                  %p369 = scmp.ge.s32.totalorder %s368, 1
                  %s373 = sphi %s341, %s341
                  %s374 = sphi %s339, %s339
                $region86: #{tpu_custom_call.1} parent=82 // loop_header_branch
                  %371 = sbr.rel (%p369) target = $region90
                $region87: #{tpu_custom_call.1} parent=82 // loop_body
                  %v375 = vld [vmem:[%s373] sm:$0xff]
                  %376 = vst [vmem:[%s374] sm:$0xff] %v375
                  %v377 = vld [vmem:[%s373 + $0x10] sm:$0xff]
                  %378 = vst [vmem:[%s374 + $0x8] sm:$0xff] %v377
                  %v379 = vld [vmem:[%s373 + $0x20] sm:$0xff]
                  %380 = vst [vmem:[%s374 + $0x10] sm:$0xff] %v379
                  %v381 = vld [vmem:[%s373 + $0x30] sm:$0xff]
                  %382 = vst [vmem:[%s374 + $0x18] sm:$0xff] %v381
                $region88: #{tpu_custom_call.1} parent=82 // loop_footer
                  %s372 = sadd.s32 1, %s368
                $region89: #{tpu_custom_call.1} parent=82 // loop_footer_branch
                  %367 = sbr.rel target = $region85
                $region90: #{tpu_custom_call.1} parent=82 // loop_exit
                  _
              $region83: #{tpu_custom_call.1} parent=67 // pred_fallthru
                _
              // Predicated region
              $region91: #{tpu_custom_call.1} parent=67 // pred_check
                _
              $region92: #{tpu_custom_call.1} parent=67 // pred_check_branch
                %384 = sbr.rel target = $region94
              $region93: #{tpu_custom_call.1} parent=67 // pred_region
                _
              $region94: #{tpu_custom_call.1} parent=67 // pred_fallthru
                _
            $region68: #{tpu_custom_call.1} parent=63 // pred_fallthru
              _
            // Predicated region
            $region69: #{tpu_custom_call.1} parent=63 // pred_check
              _
            $region70: #{tpu_custom_call.1} parent=63 // pred_check_branch
              %347 = sbr.rel target = $region72
            $region71: #{tpu_custom_call.1} parent=63 // pred_region
              loop: start=0, step=1, limit=1
              $region73: #{tpu_custom_call.1} parent=71 // loop_pre_header
                _
              $region74: #{tpu_custom_call.1} parent=71 // loop_header
                %s350 = sphi 0, %s354
                %p351 = scmp.ge.s32.totalorder %s350, 1
                %s355 = sphi %s341, %s341
                %s356 = sphi %s339, %s339
              $region75: #{tpu_custom_call.1} parent=71 // loop_header_branch
                %353 = sbr.rel (%p351) target = $region79
              $region76: #{tpu_custom_call.1} parent=71 // loop_body
                %v357 = vld [vmem:[%s355] sm:$0xff]
                %358 = vst [vmem:[%s356] sm:$0xff] %v357
                %v359 = vld [vmem:[%s355 + $0x10] sm:$0xff]
                %360 = vst [vmem:[%s356 + $0x8] sm:$0xff] %v359
                %v361 = vld [vmem:[%s355 + $0x20] sm:$0xff]
                %362 = vst [vmem:[%s356 + $0x10] sm:$0xff] %v361
                %v363 = vld [vmem:[%s355 + $0x30] sm:$0xff]
                %364 = vst [vmem:[%s356 + $0x18] sm:$0xff] %v363
              $region77: #{tpu_custom_call.1} parent=71 // loop_footer
                %s354 = sadd.s32 1, %s350
              $region78: #{tpu_custom_call.1} parent=71 // loop_footer_branch
                %349 = sbr.rel target = $region74
              $region79: #{tpu_custom_call.1} parent=71 // loop_exit
                _
            $region72: #{tpu_custom_call.1} parent=63 // pred_fallthru
              _
          $region64: #{tpu_custom_call.1} parent=59 // pred_fallthru
            _
          %385 = vnop
        $region60: #{tpu_custom_call.1} parent=55 // pred_fallthru
          _
      $region56: #{tpu_custom_call.1} parent=5 // pred_fallthru
        _
      %p386 = scmp.le.s32.totalorder 1, %s22
      %p387 = scmp.lt.s32.totalorder %s22, 3
      %p388 = pnand %p386, %p387
      %p389 = pneg %p388
      // Predicated region
      $region95: #{tpu_custom_call.1} parent=5 // pred_check
        _
      $region96: #{tpu_custom_call.1} parent=5 // pred_check_branch
        %391 = sbr.rel (%p388) target = $region98
      $region97: #{tpu_custom_call.1} parent=5 // pred_region
        %s392 = ssub.s32 %s22, 1
        %s393 = sand.u32 %s35, 1
        %s394 = sand.u32 %s35, 1
        %s395 = smul.addr %s394, 32
        %s396 = scalar_lea.vmem [#allocation3], %s395
        // Predicated region
        $region99: #{tpu_custom_call.1} parent=97 // pred_check
          %p397 = pneg %p48
        $region100: #{tpu_custom_call.1} parent=97 // pred_check_branch
          %399 = sbr.rel (%p397) target = $region102
        $region101: #{tpu_custom_call.1} parent=97 // pred_region
          _
        $region102: #{tpu_custom_call.1} parent=97 // pred_fallthru
          _
        %s400 = sand.u32 %s35, 1
        %s401 = sand.u32 %s35, 1
        %s402 = smul.addr %s401, 32
        %s403 = scalar_lea.vmem [#allocation3], %s402
        %p404 = pneg %p48
        %p405 = pneg %p45
        %p406 = pneg %p69
        %p407 = pneg %p66
        %p408 = pneg %p90
        %p409 = pneg %p87
        %p410 = pneg %p111
        %p411 = pneg %p108
        %p412 = pneg %p132
        %p413 = pneg %p129
        %p414 = pneg %p153
        %p415 = pneg %p150
        %p416 = pneg %p174
        %p417 = pneg %p171
        %p418 = pneg %p195
        %p419 = pneg %p192
        %p420 = pneg %p216
        %p421 = pneg %p213
        %p422 = pneg %p237
        %p423 = pneg %p234
        %p424 = pneg %p258
        %p425 = pneg %p255
        %p426 = pneg %p284
        %p427 = pneg %p281
        %s428 = sand.u32 %s271, 1
        %s429 = scalar_lea.sflag [#allocation5], %s428
        %s430 = sand.u32 %s271, 1
        %s431 = scalar_lea.vmem [#allocation4], %s430
        %v432 = vld [vmem:[%s396] sm:$0xff]
        %v433 = vld [vmem:[%s396 + $0x8] sm:$0xff]
        %v434 = vld [vmem:[%s396 + $0x10] sm:$0xff]
        %v435 = vld [vmem:[%s396 + $0x18] sm:$0xff]
        %v436 = vld [vmem:[%s1] sm:$0xff]
        %v437 = vld [vmem:[%s1 + $0x8] sm:$0xff]
        %v438 = vld [vmem:[%s1 + $0x10] sm:$0xff]
        %v439 = vld [vmem:[%s1 + $0x18] sm:$0xff]
        %v440 = vld [vmem:[%s1 + $0x20] sm:$0xff]
        %v441 = vld [vmem:[%s1 + $0x28] sm:$0xff]
        %v442 = vld [vmem:[%s1 + $0x30] sm:$0xff]
        %v443 = vld [vmem:[%s1 + $0x38] sm:$0xff]
        %v444 = vld [vmem:[%s1 + $0x40] sm:$0xff]
        %v445 = vld [vmem:[%s1 + $0x48] sm:$0xff]
        %v446 = vld [vmem:[%s1 + $0x50] sm:$0xff]
        %v447 = vld [vmem:[%s1 + $0x58] sm:$0xff]
        %v448 = vld [vmem:[%s1 + $0x60] sm:$0xff]
        %v449 = vld [vmem:[%s1 + $0x68] sm:$0xff]
        %v450 = vld [vmem:[%s1 + $0x70] sm:$0xff]
        %v451 = vld [vmem:[%s1 + $0x78] sm:$0xff]
        %v452 = vld [vmem:[%s2] sm:$0xff]
        %v453 = vld [vmem:[%s2 + $0x8] sm:$0xff]
        %v454 = vld [vmem:[%s2 + $0x10] sm:$0xff]
        %v455 = vld [vmem:[%s2 + $0x18] sm:$0xff]
        %v456 = vld [vmem:[%s2 + $0x20] sm:$0xff]
        %v457 = vld [vmem:[%s2 + $0x28] sm:$0xff]
        %v458 = vld [vmem:[%s2 + $0x30] sm:$0xff]
        %v459 = vld [vmem:[%s2 + $0x38] sm:$0xff]
        %v460 = vld [vmem:[%s2 + $0x40] sm:$0xff]
        %v461 = vld [vmem:[%s2 + $0x48] sm:$0xff]
        %v462 = vld [vmem:[%s2 + $0x50] sm:$0xff]
        %v463 = vld [vmem:[%s2 + $0x58] sm:$0xff]
        %v464 = vld [vmem:[%s2 + $0x60] sm:$0xff]
        %v465 = vld [vmem:[%s2 + $0x68] sm:$0xff]
        %v466 = vld [vmem:[%s2 + $0x70] sm:$0xff]
        %v467 = vld [vmem:[%s2 + $0x78] sm:$0xff]
        %469 = vset.pattern.permute.xlu0 0
        %470 = vperm.xlu0 %469, %v452
        %v471 = vpop.permute.xlu0 %470
        %474 = vset.pattern.permute.xlu0 0
        %475 = vperm.xlu0 %474, %v453
        %v476 = vpop.permute.xlu0 %475
        %479 = vset.pattern.permute.xlu0 0
        %480 = vperm.xlu0 %479, %v454
        %v481 = vpop.permute.xlu0 %480
        %484 = vset.pattern.permute.xlu0 0
        %485 = vperm.xlu0 %484, %v455
        %v486 = vpop.permute.xlu0 %485
        %489 = vset.pattern.permute.xlu0 0
        %490 = vperm.xlu0 %489, %v456
        %v491 = vpop.permute.xlu0 %490
        %494 = vset.pattern.permute.xlu0 0
        %495 = vperm.xlu0 %494, %v457
        %v496 = vpop.permute.xlu0 %495
        %499 = vset.pattern.permute.xlu0 0
        %500 = vperm.xlu0 %499, %v458
        %v501 = vpop.permute.xlu0 %500
        %504 = vset.pattern.permute.xlu0 0
        %505 = vperm.xlu0 %504, %v459
        %v506 = vpop.permute.xlu0 %505
        %509 = vset.pattern.permute.xlu0 0
        %510 = vperm.xlu0 %509, %v460
        %v511 = vpop.permute.xlu0 %510
        %514 = vset.pattern.permute.xlu0 0
        %515 = vperm.xlu0 %514, %v461
        %v516 = vpop.permute.xlu0 %515
        %519 = vset.pattern.permute.xlu0 0
        %520 = vperm.xlu0 %519, %v462
        %v521 = vpop.permute.xlu0 %520
        %524 = vset.pattern.permute.xlu0 0
        %525 = vperm.xlu0 %524, %v463
        %v526 = vpop.permute.xlu0 %525
        %529 = vset.pattern.permute.xlu0 0
        %530 = vperm.xlu0 %529, %v464
        %v531 = vpop.permute.xlu0 %530
        %534 = vset.pattern.permute.xlu0 0
        %535 = vperm.xlu0 %534, %v465
        %v536 = vpop.permute.xlu0 %535
        %539 = vset.pattern.permute.xlu0 0
        %540 = vperm.xlu0 %539, %v466
        %v541 = vpop.permute.xlu0 %540
        %544 = vset.pattern.permute.xlu0 0
        %545 = vperm.xlu0 %544, %v467
        %v546 = vpop.permute.xlu0 %545
        %vm548 = vcmask 261120
        %v550 = vsel %vm548, %v436, 0
        %v553 = vsel %vm548, %v437, 0
        %v556 = vsel %vm548, %v438, 0
        %v559 = vsel %vm548, %v439, 0
        %v562 = vsel %vm548, %v440, 0
        %v565 = vsel %vm548, %v441, 0
        %v568 = vsel %vm548, %v442, 0
        %v571 = vsel %vm548, %v443, 0
        %v574 = vsel %vm548, %v444, 0
        %v577 = vsel %vm548, %v445, 0
        %v580 = vsel %vm548, %v446, 0
        %v583 = vsel %vm548, %v447, 0
        %v586 = vsel %vm548, %v448, 0
        %v589 = vsel %vm548, %v449, 0
        %v592 = vsel %vm548, %v450, 0
        %v595 = vsel %vm548, %v451, 0
        %597 = vmatprep.subr.mxu0 0.0
        %598 = vmatpush1.msra.mxu0 %v432
        %599 = vmatprep.subr.mxu0 0.0
        %600 = vmatpush1.msra.mxu0 %v433
        %601 = vmatprep.subr.mxu0 0.0
        %602 = vmatpush1.msra.mxu0 %v434
        %603 = vmatprep.subr.mxu0 0.0
        %604 = vmatpush1.msra.mxu0 %v435
        %605 = vmatprep.subr.mxu0 0.0
        %606 = vmatpush1.msra.mxu0 0.0
        %607 = vmatprep.subr.mxu0 0.0
        %608 = vmatpush1.msra.mxu0 0.0
        %609 = vmatprep.subr.mxu0 0.0
        %610 = vmatpush1.msra.mxu0 0.0
        %611 = vmatprep.subr.mxu0 0.0
        %612 = vmatpush1.msra.mxu0 0.0
        %613 = vmatprep.subr.mxu0 0.0
        %614 = vmatpush1.msra.mxu0 0.0
        %615 = vmatprep.subr.mxu0 0.0
        %616 = vmatpush1.msra.mxu0 0.0
        %617 = vmatprep.subr.mxu0 0.0
        %618 = vmatpush1.msra.mxu0 0.0
        %619 = vmatprep.subr.mxu0 0.0
        %620 = vmatpush1.msra.mxu0 0.0
        %621 = vmatprep.subr.mxu0 0.0
        %622 = vmatpush1.msra.mxu0 0.0
        %623 = vmatprep.subr.mxu0 0.0
        %624 = vmatpush1.msra.mxu0 0.0
        %625 = vmatprep.subr.mxu0 0.0
        %626 = vmatpush1.msra.mxu0 0.0
        %627 = vmatprep.subr.mxu0 0.0
        %628 = vmatpush1.msra.mxu0 0.0
        %629 = vmatprep.subr.mxu0 0.0
        %630 = vmatpush1.msra.mxu0 0.0
        %631 = vmatprep.subr.mxu0 0.0
        %632 = vmatpush1.msra.mxu0 0.0
        %633 = vmatprep.subr.mxu0 0.0
        %634 = vmatpush1.msra.mxu0 0.0
        %635 = vmatprep.subr.mxu0 0.0
        %636 = vmatpush1.msra.mxu0 0.0
        %637 = vmatprep.subr.mxu0 0.0
        %638 = vmatpush1.msra.mxu0 0.0
        %639 = vmatprep.subr.mxu0 0.0
        %640 = vmatpush1.msra.mxu0 0.0
        %641 = vmatprep.subr.mxu0 0.0
        %642 = vmatpush1.msra.mxu0 0.0
        %643 = vmatprep.subr.mxu0 0.0
        %644 = vmatpush1.msra.mxu0 0.0
        %645 = vmatprep.subr.mxu0 0.0
        %646 = vmatpush1.msra.mxu0 0.0
        %647 = vmatprep.subr.mxu0 0.0
        %648 = vmatpush1.msra.mxu0 0.0
        %649 = vmatprep.subr.mxu0 0.0
        %650 = vmatpush1.msra.mxu0 0.0
        %651 = vmatprep.subr.mxu0 0.0
        %652 = vmatpush1.msra.mxu0 0.0
        %653 = vmatprep.subr.mxu0 0.0
        %654 = vmatpush1.msra.mxu0 0.0
        %655 = vmatprep.subr.mxu0 0.0
        %656 = vmatpush1.msra.mxu0 0.0
        %657 = vmatprep.subr.mxu0 0.0
        %658 = vmatpush1.msra.mxu0 0.0
        %659 = vmatprep.subr.mxu0 0.0
        %660 = vmatpush1.msra.mxu0 0.0
        %661 = vmatprep.mubr.f32.mxu0 0.0
        %662 = vmatmul.mubr.f32.gmra.mrb[0].mxu0 %v550
        %v663 = vpop.f32.mrb[0].mxu0
        %v664 = vadd.f32 %v471, %v663
        %v665 = vpop.f32.mrb[0].mxu0
        %666 = vmatprep.mubr.f32.mxu0 0.0
        %667 = vmatmul.mubr.f32.gmra.mrb[0].mxu0 %v553
        %v668 = vpop.f32.mrb[0].mxu0
        %v669 = vadd.f32 %v476, %v668
        %v670 = vpop.f32.mrb[0].mxu0
        %671 = vmatprep.mubr.f32.mxu0 0.0
        %672 = vmatmul.mubr.f32.gmra.mrb[0].mxu0 %v556
        %v673 = vpop.f32.mrb[0].mxu0
        %v674 = vadd.f32 %v481, %v673
        %v675 = vpop.f32.mrb[0].mxu0
        %676 = vmatprep.mubr.f32.mxu0 0.0
        %677 = vmatmul.mubr.f32.gmra.mrb[0].mxu0 %v559
        %v678 = vpop.f32.mrb[0].mxu0
        %v679 = vadd.f32 %v486, %v678
        %v680 = vpop.f32.mrb[0].mxu0
        %681 = vmatprep.mubr.f32.mxu0 0.0
        %682 = vmatmul.mubr.f32.gmra.mrb[0].mxu0 %v562
        %v683 = vpop.f32.mrb[0].mxu0
        %v684 = vadd.f32 %v491, %v683
        %v685 = vpop.f32.mrb[0].mxu0
        %686 = vmatprep.mubr.f32.mxu0 0.0
        %687 = vmatmul.mubr.f32.gmra.mrb[0].mxu0 %v565
        %v688 = vpop.f32.mrb[0].mxu0
        %v689 = vadd.f32 %v496, %v688
        %v690 = vpop.f32.mrb[0].mxu0
        %691 = vmatprep.mubr.f32.mxu0 0.0
        %692 = vmatmul.mubr.f32.gmra.mrb[0].mxu0 %v568
        %v693 = vpop.f32.mrb[0].mxu0
        %v694 = vadd.f32 %v501, %v693
        %v695 = vpop.f32.mrb[0].mxu0
        %696 = vmatprep.mubr.f32.mxu0 0.0
        %697 = vmatmul.mubr.f32.gmra.mrb[0].mxu0 %v571
        %v698 = vpop.f32.mrb[0].mxu0
        %v699 = vadd.f32 %v506, %v698
        %v700 = vpop.f32.mrb[0].mxu0
        %701 = vmatprep.mubr.f32.mxu0 0.0
        %702 = vmatmul.mubr.f32.gmra.mrb[0].mxu0 %v574
        %v703 = vpop.f32.mrb[0].mxu0
        %v704 = vadd.f32 %v511, %v703
        %v705 = vpop.f32.mrb[0].mxu0
        %706 = vmatprep.mubr.f32.mxu0 0.0
        %707 = vmatmul.mubr.f32.gmra.mrb[0].mxu0 %v577
        %v708 = vpop.f32.mrb[0].mxu0
        %v709 = vadd.f32 %v516, %v708
        %v710 = vpop.f32.mrb[0].mxu0
        %711 = vmatprep.mubr.f32.mxu0 0.0
        %712 = vmatmul.mubr.f32.gmra.mrb[0].mxu0 %v580
        %v713 = vpop.f32.mrb[0].mxu0
        %v714 = vadd.f32 %v521, %v713
        %v715 = vpop.f32.mrb[0].mxu0
        %716 = vmatprep.mubr.f32.mxu0 0.0
        %717 = vmatmul.mubr.f32.gmra.mrb[0].mxu0 %v583
        %v718 = vpop.f32.mrb[0].mxu0
        %v719 = vadd.f32 %v526, %v718
        %v720 = vpop.f32.mrb[0].mxu0
        %721 = vmatprep.mubr.f32.mxu0 0.0
        %722 = vmatmul.mubr.f32.gmra.mrb[0].mxu0 %v586
        %v723 = vpop.f32.mrb[0].mxu0
        %v724 = vadd.f32 %v531, %v723
        %v725 = vpop.f32.mrb[0].mxu0
        %726 = vmatprep.mubr.f32.mxu0 0.0
        %727 = vmatmul.mubr.f32.gmra.mrb[0].mxu0 %v589
        %v728 = vpop.f32.mrb[0].mxu0
        %v729 = vadd.f32 %v536, %v728
        %v730 = vpop.f32.mrb[0].mxu0
        %731 = vmatprep.mubr.f32.mxu0 0.0
        %732 = vmatmul.mubr.f32.gmra.mrb[0].mxu0 %v592
        %v733 = vpop.f32.mrb[0].mxu0
        %v734 = vadd.f32 %v541, %v733
        %v735 = vpop.f32.mrb[0].mxu0
        %736 = vmatprep.mubr.f32.mxu0 0.0
        %737 = vmatmul.mubr.f32.gmra.mrb[0].mxu0 %v595
        %v738 = vpop.f32.mrb[0].mxu0
        %v739 = vadd.f32 %v546, %v738
        %v740 = vpop.f32.mrb[0].mxu0
        %741 = vdwg.mxu0
        %v742 = vmax.f32 %v664, 0.0
        %v743 = vmax.f32 %v669, 0.0
        %v744 = vmax.f32 %v674, 0.0
        %v745 = vmax.f32 %v679, 0.0
        %v746 = vmax.f32 %v684, 0.0
        %v747 = vmax.f32 %v689, 0.0
        %v748 = vmax.f32 %v694, 0.0
        %v749 = vmax.f32 %v699, 0.0
        %v750 = vmax.f32 %v704, 0.0
        %v751 = vmax.f32 %v709, 0.0
        %v752 = vmax.f32 %v714, 0.0
        %v753 = vmax.f32 %v719, 0.0
        %v754 = vmax.f32 %v724, 0.0
        %v755 = vmax.f32 %v729, 0.0
        %v756 = vmax.f32 %v734, 0.0
        %v757 = vmax.f32 %v739, 0.0
        %v758 = vld [vmem:[%s3] sm:$0xff]
        %v759 = vld [vmem:[%s3 + $0x8] sm:$0xff]
        %v760 = vld [vmem:[%s3 + $0x10] sm:$0xff]
        %v761 = vld [vmem:[%s3 + $0x18] sm:$0xff]
        %v762 = vld [vmem:[%s3 + $0x20] sm:$0xff]
        %v763 = vld [vmem:[%s3 + $0x28] sm:$0xff]
        %v764 = vld [vmem:[%s3 + $0x30] sm:$0xff]
        %v765 = vld [vmem:[%s3 + $0x38] sm:$0xff]
        %v766 = vld [vmem:[%s4] sm:$0xff]
        %v767 = vld [vmem:[%s4 + $0x8] sm:$0xff]
        %v768 = vld [vmem:[%s4 + $0x10] sm:$0xff]
        %v769 = vld [vmem:[%s4 + $0x18] sm:$0xff]
        %v770 = vld [vmem:[%s4 + $0x20] sm:$0xff]
        %v771 = vld [vmem:[%s4 + $0x28] sm:$0xff]
        %v772 = vld [vmem:[%s4 + $0x30] sm:$0xff]
        %v773 = vld [vmem:[%s4 + $0x38] sm:$0xff]
        %775 = vset.pattern.permute.xlu0 0
        %776 = vperm.xlu0 %775, %v766
        %v777 = vpop.permute.xlu0 %776
        %780 = vset.pattern.permute.xlu0 0
        %781 = vperm.xlu0 %780, %v767
        %v782 = vpop.permute.xlu0 %781
        %785 = vset.pattern.permute.xlu0 0
        %786 = vperm.xlu0 %785, %v768
        %v787 = vpop.permute.xlu0 %786
        %790 = vset.pattern.permute.xlu0 0
        %791 = vperm.xlu0 %790, %v769
        %v792 = vpop.permute.xlu0 %791
        %795 = vset.pattern.permute.xlu0 0
        %796 = vperm.xlu0 %795, %v770
        %v797 = vpop.permute.xlu0 %796
        %800 = vset.pattern.permute.xlu0 0
        %801 = vperm.xlu0 %800, %v771
        %v802 = vpop.permute.xlu0 %801
        %805 = vset.pattern.permute.xlu0 0
        %806 = vperm.xlu0 %805, %v772
        %v807 = vpop.permute.xlu0 %806
        %810 = vset.pattern.permute.xlu0 0
        %811 = vperm.xlu0 %810, %v773
        %v812 = vpop.permute.xlu0 %811
        %814 = vmatprep.subr.mxu0 0.0
        %815 = vmatpush1.msra.mxu0 %v742
        %816 = vmatprep.subr.mxu0 0.0
        %817 = vmatpush1.msra.mxu0 %v743
        %818 = vmatprep.subr.mxu0 0.0
        %819 = vmatpush1.msra.mxu0 %v744
        %820 = vmatprep.subr.mxu0 0.0
        %821 = vmatpush1.msra.mxu0 %v745
        %822 = vmatprep.subr.mxu0 0.0
        %823 = vmatpush1.msra.mxu0 %v746
        %824 = vmatprep.subr.mxu0 0.0
        %825 = vmatpush1.msra.mxu0 %v747
        %826 = vmatprep.subr.mxu0 0.0
        %827 = vmatpush1.msra.mxu0 %v748
        %828 = vmatprep.subr.mxu0 0.0
        %829 = vmatpush1.msra.mxu0 %v749
        %830 = vmatprep.subr.mxu0 0.0
        %831 = vmatpush1.msra.mxu0 %v750
        %832 = vmatprep.subr.mxu0 0.0
        %833 = vmatpush1.msra.mxu0 %v751
        %834 = vmatprep.subr.mxu0 0.0
        %835 = vmatpush1.msra.mxu0 %v752
        %836 = vmatprep.subr.mxu0 0.0
        %837 = vmatpush1.msra.mxu0 %v753
        %838 = vmatprep.subr.mxu0 0.0
        %839 = vmatpush1.msra.mxu0 %v754
        %840 = vmatprep.subr.mxu0 0.0
        %841 = vmatpush1.msra.mxu0 %v755
        %842 = vmatprep.subr.mxu0 0.0
        %843 = vmatpush1.msra.mxu0 %v756
        %844 = vmatprep.subr.mxu0 0.0
        %845 = vmatpush1.msra.mxu0 %v757
        %846 = vmatprep.subr.mxu0 0.0
        %847 = vmatpush1.msra.mxu0 0.0
        %848 = vmatprep.subr.mxu0 0.0
        %849 = vmatpush1.msra.mxu0 0.0
        %850 = vmatprep.subr.mxu0 0.0
        %851 = vmatpush1.msra.mxu0 0.0
        %852 = vmatprep.subr.mxu0 0.0
        %853 = vmatpush1.msra.mxu0 0.0
        %854 = vmatprep.subr.mxu0 0.0
        %855 = vmatpush1.msra.mxu0 0.0
        %856 = vmatprep.subr.mxu0 0.0
        %857 = vmatpush1.msra.mxu0 0.0
        %858 = vmatprep.subr.mxu0 0.0
        %859 = vmatpush1.msra.mxu0 0.0
        %860 = vmatprep.subr.mxu0 0.0
        %861 = vmatpush1.msra.mxu0 0.0
        %862 = vmatprep.subr.mxu0 0.0
        %863 = vmatpush1.msra.mxu0 0.0
        %864 = vmatprep.subr.mxu0 0.0
        %865 = vmatpush1.msra.mxu0 0.0
        %866 = vmatprep.subr.mxu0 0.0
        %867 = vmatpush1.msra.mxu0 0.0
        %868 = vmatprep.subr.mxu0 0.0
        %869 = vmatpush1.msra.mxu0 0.0
        %870 = vmatprep.subr.mxu0 0.0
        %871 = vmatpush1.msra.mxu0 0.0
        %872 = vmatprep.subr.mxu0 0.0
        %873 = vmatpush1.msra.mxu0 0.0
        %874 = vmatprep.subr.mxu0 0.0
        %875 = vmatpush1.msra.mxu0 0.0
        %876 = vmatprep.subr.mxu0 0.0
        %877 = vmatpush1.msra.mxu0 0.0
        %878 = vmatprep.mubr.f32.mxu0 0.0
        %879 = vmatmul.mubr.f32.gmra.mrb[0].mxu0 %v758
        %v880 = vpop.f32.mrb[0].mxu0
        %v881 = vadd.f32 %v777, %v880
        %v882 = vpop.f32.mrb[0].mxu0
        %883 = vmatprep.mubr.f32.mxu0 0.0
        %884 = vmatmul.mubr.f32.gmra.mrb[0].mxu0 %v759
        %v885 = vpop.f32.mrb[0].mxu0
        %v886 = vadd.f32 %v782, %v885
        %v887 = vpop.f32.mrb[0].mxu0
        %888 = vmatprep.mubr.f32.mxu0 0.0
        %889 = vmatmul.mubr.f32.gmra.mrb[0].mxu0 %v760
        %v890 = vpop.f32.mrb[0].mxu0
        %v891 = vadd.f32 %v787, %v890
        %v892 = vpop.f32.mrb[0].mxu0
        %893 = vmatprep.mubr.f32.mxu0 0.0
        %894 = vmatmul.mubr.f32.gmra.mrb[0].mxu0 %v761
        %v895 = vpop.f32.mrb[0].mxu0
        %v896 = vadd.f32 %v792, %v895
        %v897 = vpop.f32.mrb[0].mxu0
        %898 = vmatprep.mubr.f32.mxu0 0.0
        %899 = vmatmul.mubr.f32.gmra.mrb[0].mxu0 %v762
        %v900 = vpop.f32.mrb[0].mxu0
        %v901 = vadd.f32 %v797, %v900
        %v902 = vpop.f32.mrb[0].mxu0
        %903 = vmatprep.mubr.f32.mxu0 0.0
        %904 = vmatmul.mubr.f32.gmra.mrb[0].mxu0 %v763
        %v905 = vpop.f32.mrb[0].mxu0
        %v906 = vadd.f32 %v802, %v905
        %v907 = vpop.f32.mrb[0].mxu0
        %908 = vmatprep.mubr.f32.mxu0 0.0
        %909 = vmatmul.mubr.f32.gmra.mrb[0].mxu0 %v764
        %v910 = vpop.f32.mrb[0].mxu0
        %v911 = vadd.f32 %v807, %v910
        %v912 = vpop.f32.mrb[0].mxu0
        %913 = vmatprep.mubr.f32.mxu0 0.0
        %914 = vmatmul.mubr.f32.gmra.mrb[0].mxu0 %v765
        %v915 = vpop.f32.mrb[0].mxu0
        %v916 = vadd.f32 %v812, %v915
        %v917 = vpop.f32.mrb[0].mxu0
        %918 = vdwg.mxu0
        %v919 = vmax.f32 %v881, 0.0
        %v920 = vmax.f32 %v886, 0.0
        %v921 = vmax.f32 %v891, 0.0
        %v922 = vmax.f32 %v896, 0.0
        %v923 = vmax.f32 %v901, 0.0
        %v924 = vmax.f32 %v906, 0.0
        %v925 = vmax.f32 %v911, 0.0
        %v926 = vmax.f32 %v916, 0.0
        %v927 = vld [vmem:[%s5] sm:$0xff]
        %v928 = vld [vmem:[%s5 + $0x8] sm:$0xff]
        %v929 = vld [vmem:[%s5 + $0x10] sm:$0xff]
        %v930 = vld [vmem:[%s5 + $0x18] sm:$0xff]
        %v931 = vld [vmem:[%s6] sm:$0xff]
        %v932 = vld [vmem:[%s6 + $0x8] sm:$0xff]
        %v933 = vld [vmem:[%s6 + $0x10] sm:$0xff]
        %v934 = vld [vmem:[%s6 + $0x18] sm:$0xff]
        %936 = vset.pattern.permute.xlu0 0
        %937 = vperm.xlu0 %936, %v931
        %v938 = vpop.permute.xlu0 %937
        %941 = vset.pattern.permute.xlu0 0
        %942 = vperm.xlu0 %941, %v932
        %v943 = vpop.permute.xlu0 %942
        %946 = vset.pattern.permute.xlu0 0
        %947 = vperm.xlu0 %946, %v933
        %v948 = vpop.permute.xlu0 %947
        %951 = vset.pattern.permute.xlu0 0
        %952 = vperm.xlu0 %951, %v934
        %v953 = vpop.permute.xlu0 %952
        %vm955 = vcmask 523264
        %v957 = vsel %vm955, %v927, 0
        %v960 = vsel %vm955, %v928, 0
        %v963 = vsel %vm955, %v929, 0
        %v966 = vsel %vm955, %v930, 0
        %968 = vmatprep.subr.mxu0 0.0
        %969 = vmatpush1.msra.mxu0 %v919
        %970 = vmatprep.subr.mxu0 0.0
        %971 = vmatpush1.msra.mxu0 %v920
        %972 = vmatprep.subr.mxu0 0.0
        %973 = vmatpush1.msra.mxu0 %v921
        %974 = vmatprep.subr.mxu0 0.0
        %975 = vmatpush1.msra.mxu0 %v922
        %976 = vmatprep.subr.mxu0 0.0
        %977 = vmatpush1.msra.mxu0 %v923
        %978 = vmatprep.subr.mxu0 0.0
        %979 = vmatpush1.msra.mxu0 %v924
        %980 = vmatprep.subr.mxu0 0.0
        %981 = vmatpush1.msra.mxu0 %v925
        %982 = vmatprep.subr.mxu0 0.0
        %983 = vmatpush1.msra.mxu0 %v926
        %984 = vmatprep.subr.mxu0 0.0
        %985 = vmatpush1.msra.mxu0 0.0
        %986 = vmatprep.subr.mxu0 0.0
        %987 = vmatpush1.msra.mxu0 0.0
        %988 = vmatprep.subr.mxu0 0.0
        %989 = vmatpush1.msra.mxu0 0.0
        %990 = vmatprep.subr.mxu0 0.0
        %991 = vmatpush1.msra.mxu0 0.0
        %992 = vmatprep.subr.mxu0 0.0
        %993 = vmatpush1.msra.mxu0 0.0
        %994 = vmatprep.subr.mxu0 0.0
        %995 = vmatpush1.msra.mxu0 0.0
        %996 = vmatprep.subr.mxu0 0.0
        %997 = vmatpush1.msra.mxu0 0.0
        %998 = vmatprep.subr.mxu0 0.0
        %999 = vmatpush1.msra.mxu0 0.0
        %1000 = vmatprep.subr.mxu0 0.0
        %1001 = vmatpush1.msra.mxu0 0.0
        %1002 = vmatprep.subr.mxu0 0.0
        %1003 = vmatpush1.msra.mxu0 0.0
        %1004 = vmatprep.subr.mxu0 0.0
        %1005 = vmatpush1.msra.mxu0 0.0
        %1006 = vmatprep.subr.mxu0 0.0
        %1007 = vmatpush1.msra.mxu0 0.0
        %1008 = vmatprep.subr.mxu0 0.0
        %1009 = vmatpush1.msra.mxu0 0.0
        %1010 = vmatprep.subr.mxu0 0.0
        %1011 = vmatpush1.msra.mxu0 0.0
        %1012 = vmatprep.subr.mxu0 0.0
        %1013 = vmatpush1.msra.mxu0 0.0
        %1014 = vmatprep.subr.mxu0 0.0
        %1015 = vmatpush1.msra.mxu0 0.0
        %1016 = vmatprep.subr.mxu0 0.0
        %1017 = vmatpush1.msra.mxu0 0.0
        %1018 = vmatprep.subr.mxu0 0.0
        %1019 = vmatpush1.msra.mxu0 0.0
        %1020 = vmatprep.subr.mxu0 0.0
        %1021 = vmatpush1.msra.mxu0 0.0
        %1022 = vmatprep.subr.mxu0 0.0
        %1023 = vmatpush1.msra.mxu0 0.0
        %1024 = vmatprep.subr.mxu0 0.0
        %1025 = vmatpush1.msra.mxu0 0.0
        %1026 = vmatprep.subr.mxu0 0.0
        %1027 = vmatpush1.msra.mxu0 0.0
        %1028 = vmatprep.subr.mxu0 0.0
        %1029 = vmatpush1.msra.mxu0 0.0
        %1030 = vmatprep.subr.mxu0 0.0
        %1031 = vmatpush1.msra.mxu0 0.0
        %1032 = vmatprep.mubr.f32.mxu0 0.0
        %1033 = vmatmul.mubr.f32.gmra.mrb[0].mxu0 %v957
        %v1034 = vpop.f32.mrb[0].mxu0
        %v1035 = vadd.f32 %v938, %v1034
        %v1036 = vpop.f32.mrb[0].mxu0
        %1037 = vmatprep.mubr.f32.mxu0 0.0
        %1038 = vmatmul.mubr.f32.gmra.mrb[0].mxu0 %v960
        %v1039 = vpop.f32.mrb[0].mxu0
        %v1040 = vadd.f32 %v943, %v1039
        %v1041 = vpop.f32.mrb[0].mxu0
        %1042 = vmatprep.mubr.f32.mxu0 0.0
        %1043 = vmatmul.mubr.f32.gmra.mrb[0].mxu0 %v963
        %v1044 = vpop.f32.mrb[0].mxu0
        %v1045 = vadd.f32 %v948, %v1044
        %v1046 = vpop.f32.mrb[0].mxu0
        %1047 = vmatprep.mubr.f32.mxu0 0.0
        %1048 = vmatmul.mubr.f32.gmra.mrb[0].mxu0 %v966
        %v1049 = vpop.f32.mrb[0].mxu0
        %v1050 = vadd.f32 %v953, %v1049
        %v1051 = vpop.f32.mrb[0].mxu0
        %1052 = vdwg.mxu0
        %v1053 = vmax.f32 %v1035, 0.0
        %v1054 = vmax.f32 %v1040, 0.0
        %v1055 = vmax.f32 %v1045, 0.0
        %v1056 = vmax.f32 %v1050, 0.0
        %v1057 = vld [vmem:[%s7] sm:$0xff]
        %v1058 = vld [vmem:[%s7 + $0x8] sm:$0xff]
        %v1059 = vld [vmem:[%s8] sm:$0xff]
        %v1060 = vld [vmem:[%s8 + $0x8] sm:$0xff]
        %1062 = vset.pattern.permute.xlu0 0
        %1063 = vperm.xlu0 %1062, %v1059
        %v1064 = vpop.permute.xlu0 %1063
        %1067 = vset.pattern.permute.xlu0 0
        %1068 = vperm.xlu0 %1067, %v1060
        %v1069 = vpop.permute.xlu0 %1068
        %v1072 = vsel %vm548, %v1057, 0
        %v1075 = vsel %vm548, %v1058, 0
        %1077 = vmatprep.subr.mxu0 0.0
        %1078 = vmatpush1.msra.mxu0 %v1053
        %1079 = vmatprep.subr.mxu0 0.0
        %1080 = vmatpush1.msra.mxu0 %v1054
        %1081 = vmatprep.subr.mxu0 0.0
        %1082 = vmatpush1.msra.mxu0 %v1055
        %1083 = vmatprep.subr.mxu0 0.0
        %1084 = vmatpush1.msra.mxu0 %v1056
        %1085 = vmatprep.subr.mxu0 0.0
        %1086 = vmatpush1.msra.mxu0 0.0
        %1087 = vmatprep.subr.mxu0 0.0
        %1088 = vmatpush1.msra.mxu0 0.0
        %1089 = vmatprep.subr.mxu0 0.0
        %1090 = vmatpush1.msra.mxu0 0.0
        %1091 = vmatprep.subr.mxu0 0.0
        %1092 = vmatpush1.msra.mxu0 0.0
        %1093 = vmatprep.subr.mxu0 0.0
        %1094 = vmatpush1.msra.mxu0 0.0
        %1095 = vmatprep.subr.mxu0 0.0
        %1096 = vmatpush1.msra.mxu0 0.0
        %1097 = vmatprep.subr.mxu0 0.0
        %1098 = vmatpush1.msra.mxu0 0.0
        %1099 = vmatprep.subr.mxu0 0.0
        %1100 = vmatpush1.msra.mxu0 0.0
        %1101 = vmatprep.subr.mxu0 0.0
        %1102 = vmatpush1.msra.mxu0 0.0
        %1103 = vmatprep.subr.mxu0 0.0
        %1104 = vmatpush1.msra.mxu0 0.0
        %1105 = vmatprep.subr.mxu0 0.0
        %1106 = vmatpush1.msra.mxu0 0.0
        %1107 = vmatprep.subr.mxu0 0.0
        %1108 = vmatpush1.msra.mxu0 0.0
        %1109 = vmatprep.subr.mxu0 0.0
        %1110 = vmatpush1.msra.mxu0 0.0
        %1111 = vmatprep.subr.mxu0 0.0
        %1112 = vmatpush1.msra.mxu0 0.0
        %1113 = vmatprep.subr.mxu0 0.0
        %1114 = vmatpush1.msra.mxu0 0.0
        %1115 = vmatprep.subr.mxu0 0.0
        %1116 = vmatpush1.msra.mxu0 0.0
        %1117 = vmatprep.subr.mxu0 0.0
        %1118 = vmatpush1.msra.mxu0 0.0
        %1119 = vmatprep.subr.mxu0 0.0
        %1120 = vmatpush1.msra.mxu0 0.0
        %1121 = vmatprep.subr.mxu0 0.0
        %1122 = vmatpush1.msra.mxu0 0.0
        %1123 = vmatprep.subr.mxu0 0.0
        %1124 = vmatpush1.msra.mxu0 0.0
        %1125 = vmatprep.subr.mxu0 0.0
        %1126 = vmatpush1.msra.mxu0 0.0
        %1127 = vmatprep.subr.mxu0 0.0
        %1128 = vmatpush1.msra.mxu0 0.0
        %1129 = vmatprep.subr.mxu0 0.0
        %1130 = vmatpush1.msra.mxu0 0.0
        %1131 = vmatprep.subr.mxu0 0.0
        %1132 = vmatpush1.msra.mxu0 0.0
        %1133 = vmatprep.subr.mxu0 0.0
        %1134 = vmatpush1.msra.mxu0 0.0
        %1135 = vmatprep.subr.mxu0 0.0
        %1136 = vmatpush1.msra.mxu0 0.0
        %1137 = vmatprep.subr.mxu0 0.0
        %1138 = vmatpush1.msra.mxu0 0.0
        %1139 = vmatprep.subr.mxu0 0.0
        %1140 = vmatpush1.msra.mxu0 0.0
        %1141 = vmatprep.mubr.f32.mxu0 0.0
        %1142 = vmatmul.mubr.f32.gmra.mrb[0].mxu0 %v1072
        %v1143 = vpop.f32.mrb[0].mxu0
        %v1144 = vadd.f32 %v1064, %v1143
        %v1145 = vpop.f32.mrb[0].mxu0
        %1146 = vmatprep.mubr.f32.mxu0 0.0
        %1147 = vmatmul.mubr.f32.gmra.mrb[0].mxu0 %v1075
        %v1148 = vpop.f32.mrb[0].mxu0
        %v1149 = vadd.f32 %v1069, %v1148
        %v1150 = vpop.f32.mrb[0].mxu0
        %1151 = vdwg.mxu0
        %v1152 = vmax.f32 %v1144, 0.0
        %v1153 = vmax.f32 %v1149, 0.0
        %v1154 = vld [vmem:[%s9] sm:$0x1]
        %v1155 = vld [vmem:[#allocation2] sm:$0x1]
        %1157 = vset.pattern.permute.xlu0 0
        %1158 = vperm.xlu0 %1157, %v1155
        %v1159 = vpop.permute.xlu0 %1158
        %v1161 = vlaneseq
        %v1162 = vshrl.u32 %v1161, 7
        %v1163 = vsub.s32 0, %v1162
        %v1164 = vrot.slane %v1159, %v1163
        %vm1165 = vcmask 130048
        %v1167 = vsel %vm1165, %v1154, 0
        %1169 = vmatprep.subr.mxu0 0.0
        %1170 = vmatpush1.msra.mxu0 %v1152
        %1171 = vmatprep.subr.mxu0 0.0
        %1172 = vmatpush1.msra.mxu0 %v1153
        %1173 = vmatprep.subr.mxu0 0.0
        %1174 = vmatpush1.msra.mxu0 0.0
        %1175 = vmatprep.subr.mxu0 0.0
        %1176 = vmatpush1.msra.mxu0 0.0
        %1177 = vmatprep.subr.mxu0 0.0
        %1178 = vmatpush1.msra.mxu0 0.0
        %1179 = vmatprep.subr.mxu0 0.0
        %1180 = vmatpush1.msra.mxu0 0.0
        %1181 = vmatprep.subr.mxu0 0.0
        %1182 = vmatpush1.msra.mxu0 0.0
        %1183 = vmatprep.subr.mxu0 0.0
        %1184 = vmatpush1.msra.mxu0 0.0
        %1185 = vmatprep.subr.mxu0 0.0
        %1186 = vmatpush1.msra.mxu0 0.0
        %1187 = vmatprep.subr.mxu0 0.0
        %1188 = vmatpush1.msra.mxu0 0.0
        %1189 = vmatprep.subr.mxu0 0.0
        %1190 = vmatpush1.msra.mxu0 0.0
        %1191 = vmatprep.subr.mxu0 0.0
        %1192 = vmatpush1.msra.mxu0 0.0
        %1193 = vmatprep.subr.mxu0 0.0
        %1194 = vmatpush1.msra.mxu0 0.0
        %1195 = vmatprep.subr.mxu0 0.0
        %1196 = vmatpush1.msra.mxu0 0.0
        %1197 = vmatprep.subr.mxu0 0.0
        %1198 = vmatpush1.msra.mxu0 0.0
        %1199 = vmatprep.subr.mxu0 0.0
        %1200 = vmatpush1.msra.mxu0 0.0
        %1201 = vmatprep.subr.mxu0 0.0
        %1202 = vmatpush1.msra.mxu0 0.0
        %1203 = vmatprep.subr.mxu0 0.0
        %1204 = vmatpush1.msra.mxu0 0.0
        %1205 = vmatprep.subr.mxu0 0.0
        %1206 = vmatpush1.msra.mxu0 0.0
        %1207 = vmatprep.subr.mxu0 0.0
        %1208 = vmatpush1.msra.mxu0 0.0
        %1209 = vmatprep.subr.mxu0 0.0
        %1210 = vmatpush1.msra.mxu0 0.0
        %1211 = vmatprep.subr.mxu0 0.0
        %1212 = vmatpush1.msra.mxu0 0.0
        %1213 = vmatprep.subr.mxu0 0.0
        %1214 = vmatpush1.msra.mxu0 0.0
        %1215 = vmatprep.subr.mxu0 0.0
        %1216 = vmatpush1.msra.mxu0 0.0
        %1217 = vmatprep.subr.mxu0 0.0
        %1218 = vmatpush1.msra.mxu0 0.0
        %1219 = vmatprep.subr.mxu0 0.0
        %1220 = vmatpush1.msra.mxu0 0.0
        %1221 = vmatprep.subr.mxu0 0.0
        %1222 = vmatpush1.msra.mxu0 0.0
        %1223 = vmatprep.subr.mxu0 0.0
        %1224 = vmatpush1.msra.mxu0 0.0
        %1225 = vmatprep.subr.mxu0 0.0
        %1226 = vmatpush1.msra.mxu0 0.0
        %1227 = vmatprep.subr.mxu0 0.0
        %1228 = vmatpush1.msra.mxu0 0.0
        %1229 = vmatprep.subr.mxu0 0.0
        %1230 = vmatpush1.msra.mxu0 0.0
        %1231 = vmatprep.subr.mxu0 0.0
        %1232 = vmatpush1.msra.mxu0 0.0
        %1233 = vmatprep.mubr.f32.mxu0 0.0
        %1234 = vmatmul.mubr.f32.gmra.mrb[0].mxu0 %v1167
        %v1235 = vpop.f32.mrb[0].mxu0
        %v1236 = vadd.f32 %v1164, %v1235
        %v1237 = vpop.f32.mrb[0].mxu0
        %1238 = vdwg.mxu0
        %v1239 = vxor.u32 %v1236, 2147483648
        %v1240 = vmul.f32 %v1239, 1.442695
        %v1241 = vpow.pop %v1240
        %v1242 = vadd.f32 %v1241, 1.0
        %v1243 = vrcp.pop %v1242
        %v1244 = vmul.f32 1.0, %v1243
        %1245 = vst [vmem:[%s431] sm:$0x1] %v1244
        %s1246 = sand.u32 %s271, 1
        %s1247 = scalar_lea.sflag [#allocation5], %s1246
        %s1248 = sand.u32 %s271, 1
        %s1249 = scalar_lea.vmem [#allocation4], %s1248
        // Predicated region
        $region103: #{tpu_custom_call.1} parent=97 // pred_check
          %p1250 = pneg %p281
        $region104: #{tpu_custom_call.1} parent=97 // pred_check_branch
          %1252 = sbr.rel (%p1250) target = $region106
        $region105: #{tpu_custom_call.1} parent=97 // pred_region
          %s1254 = ssub.s32 16, 16
          %1255 = vsyncadd %s1247, %s1254
          %s1256 = smul.addr %s27, 16
          %s1257 = scalar_lea.hbm %s11, %s1256
          %s1259 = sshll.u32 %s1249, 4
          %s1260 = int_to_ptr.vmem [resolvable:$true] %s1259
          %1262 = dma.vmem_to_hbm [thread:$0]  %s1260, 16, %s1257, %s1247
        $region106: #{tpu_custom_call.1} parent=97 // pred_fallthru
          _
      $region98: #{tpu_custom_call.1} parent=5 // pred_fallthru
        _
      %p1263 = scmp.le.s32.totalorder 2, %s22
      // Predicated region
      $region107: #{tpu_custom_call.1} parent=5 // pred_check
        %p1264 = pneg %p1263
      $region108: #{tpu_custom_call.1} parent=5 // pred_check_branch
        %1266 = sbr.rel (%p1264) target = $region110
      $region109: #{tpu_custom_call.1} parent=5 // pred_region
        %s1267 = ssub.s32 %s22, 2
        // Predicated region
        $region111: #{tpu_custom_call.1} parent=109 // pred_check
          %p1268 = pneg %p287
        $region112: #{tpu_custom_call.1} parent=109 // pred_check_branch
          %1270 = sbr.rel (%p1268) target = $region114
        $region113: #{tpu_custom_call.1} parent=109 // pred_region
          %s1271 = sand.u32 %s272, 1
          %s1272 = scalar_lea.sflag [#allocation5], %s1271
          %s1273 = sand.u32 %s272, 1
          %s1274 = scalar_lea.vmem [#allocation4], %s1273
          %1275 = dma.done %s1272, 16
        $region114: #{tpu_custom_call.1} parent=109 // pred_fallthru
          _
      $region110: #{tpu_custom_call.1} parent=5 // pred_fallthru
        _
    $region6: #{tpu_custom_call.1} parent=1 // loop_footer
      %s26 = sadd.s32 1, %s22
    $region7: #{tpu_custom_call.1} parent=1 // loop_footer_branch
      %21 = sbr.rel target = $region3
    $region8: #{tpu_custom_call.1} parent=1 // loop_exit
      _
    %1276 = vsyncpa [#allocation5], 1
    %s1277 = scalar_lea.sflag [#allocation5], 1
    %1278 = vsyncpa %s1277, 1

</llo_original>
